<compile_context>
chip_gen: v6e
topology: v6e:2x2x1
jax: 0.10.0
libtpu: 0.0.40
codegen_flags: <defaults>
</compile_context>

<pallas_src>
import functools

import numpy as np
import jax
import jax.numpy as jnp
from jax.experimental import pallas as pl
from jax.experimental.pallas import tpu as pltpu

_VMEM_LIMIT = 64 * 1024 * 1024


def _elu(x):
    # Clamp before exp so the unused branch of where() never produces inf and
    # never wastes EUP range.  (expm1 avoided: exp lowering is guaranteed.)
    return jnp.where(x > 0, x, jnp.exp(jnp.minimum(x, 0.0)) - 1.0)


def _row_tile(n):
    return 128 if n >= 128 else n


# ----------------------------------------------------------------------------
# Kernel 1: batched feature projection  h = x @ W_all,  f1 = h @ A1,  f2 = h @ A2
# (A1 / A2 are block-diagonal so f1[:, hd] = h_hd @ a1_hd, f2[:, hd] = h_hd @ a2_hd)
# ----------------------------------------------------------------------------
def _proj_kernel(x_ref, w_ref, a1_ref, a2_ref, h_ref, f1_ref, f2_ref):
    h = jnp.dot(x_ref[...], w_ref[...], preferred_element_type=jnp.float32)
    h_ref[...] = h
    f1_ref[...] = jnp.dot(h, a1_ref[...], preferred_element_type=jnp.float32)
    f2_ref[...] = jnp.dot(h, a2_ref[...], preferred_element_type=jnp.float32)


def project(x, w_all, a1_blk, a2_blk, *, tm):
    n, f_in = x.shape
    h_dim = w_all.shape[1]
    nh = a1_blk.shape[1]
    grid = (pl.cdiv(n, tm),)
    cost = pl.CostEstimate(
        flops=int(2 * n * f_in * h_dim + 4 * n * h_dim * nh),
        transcendentals=0,
        bytes_accessed=int(4 * (n * f_in + f_in * h_dim + 2 * h_dim * nh
                                + n * h_dim + 2 * n * nh)))
    return pl.pallas_call(
        _proj_kernel,
        out_shape=(jax.ShapeDtypeStruct((n, h_dim), jnp.float32),
                   jax.ShapeDtypeStruct((n, nh), jnp.float32),
                   jax.ShapeDtypeStruct((n, nh), jnp.float32)),
        grid=grid,
        in_specs=[pl.BlockSpec((tm, f_in), lambda i: (i, 0)),
                  pl.BlockSpec((f_in, h_dim), lambda i: (0, 0)),
                  pl.BlockSpec((h_dim, nh), lambda i: (0, 0)),
                  pl.BlockSpec((h_dim, nh), lambda i: (0, 0))],
        out_specs=(pl.BlockSpec((tm, h_dim), lambda i: (i, 0)),
                   pl.BlockSpec((tm, nh), lambda i: (i, 0)),
                   pl.BlockSpec((tm, nh), lambda i: (i, 0))),
        compiler_params=pltpu.CompilerParams(
            dimension_semantics=("parallel",),
            vmem_limit_bytes=_VMEM_LIMIT),
        cost_estimate=cost,
    )(x, w_all, a1_blk, a2_blk)


# ----------------------------------------------------------------------------
# Kernel 2: fused multi-head structural-fingerprint attention (row-tiled).
# adj / adj_ad row slabs are loaded once per row block and shared by all heads.
# ----------------------------------------------------------------------------
def _mha_kernel(nheads, nhid, alpha, apply_elu,
                f1_ref, f2t_ref, h_ref, adj_ref, adj_ad_ref, w_ref, out_ref):
    h = h_ref[...]                    # (N, nheads*nhid), resident in VMEM
    adj = adj_ref[...]                # (TM, N) row slab
    adj_ad = adj_ad_ref[...]          # (TM, N) row slab
    neg = jnp.float32(-9e15)
    for hd in range(nheads):          # static unroll over heads
        e = f1_ref[:, hd:hd + 1] + f2t_ref[hd:hd + 1, :]          # (TM, N)
        e = jnp.where(e > 0, e, alpha * e)                        # LeakyReLU
        w_ei = jnp.abs(w_ref[0:1, hd:hd + 1])                     # (1, 1)
        w_si = jnp.abs(w_ref[1:2, hd:hd + 1])
        e = w_ei * e + w_si * adj_ad
        e = jnp.where(adj > 0, e, neg)                            # mask non-edges
        e = e - jnp.max(e, axis=1, keepdims=True)                 # row softmax
        p = jnp.exp(e)
        att = p / jnp.sum(p, axis=1, keepdims=True)
        # TODO(synk): attention dropout skipped - module runs in eval mode here.
        hp = jnp.dot(att, h[:, hd * nhid:(hd + 1) * nhid],
                     preferred_element_type=jnp.float32)          # (TM, nhid)
        if apply_elu:
            hp = _elu(hp)
        out_ref[:, hd * nhid:(hd + 1) * nhid] = hp


def multi_head_attention(f1, f2t, h, adj, adj_ad, w_scal, *, nheads, nhid,
                         alpha, apply_elu, tm):
    n = adj.shape[0]
    h_dim = h.shape[1]
    grid = (pl.cdiv(n, tm),)
    cost = pl.CostEstimate(
        flops=int(nheads * (2 * n * n * nhid + 8 * n * n)),
        transcendentals=int(nheads * n * n),
        bytes_accessed=int(4 * (2 * n * n + 2 * n * h_dim + 3 * n * nheads)))
    return pl.pallas_call(
        functools.partial(_mha_kernel, nheads, nhid, alpha, apply_elu),
        out_shape=jax.ShapeDtypeStruct((n, h_dim), jnp.float32),
        grid=grid,
        in_specs=[
            pl.BlockSpec((tm, nheads), lambda i: (i, 0)),     # f1 row block
            pl.BlockSpec((nheads, n), lambda i: (0, 0)),      # f2^T, resident
            pl.BlockSpec((n, h_dim), lambda i: (0, 0)),       # h, resident
            pl.BlockSpec((tm, n), lambda i: (i, 0)),          # adj row slab
            pl.BlockSpec((tm, n), lambda i: (i, 0)),          # adj_ad row slab
            pl.BlockSpec((2, nheads), lambda i: (0, 0)),      # W_ei / W_si per head
        ],
        out_specs=pl.BlockSpec((tm, h_dim), lambda i: (i, 0)),
        compiler_params=pltpu.CompilerParams(
            dimension_semantics=("parallel",),
            vmem_limit_bytes=_VMEM_LIMIT),
        cost_estimate=cost,
    )(f1, f2t, h, adj, adj_ad, w_scal)


# ----------------------------------------------------------------------------
# Kernel 3: out_att (single head, concat=False) fused with the classifier head:
#   elu(att @ h)  ->  elu(. @ lin_W + b)  ->  log_softmax(dim=1)
# ----------------------------------------------------------------------------
def _out_head_kernel(alpha, f1_ref, f2t_ref, h_ref, adj_ref, adj_ad_ref,
                     w_ref, lin_w_ref, lin_b_ref, out_ref):
    e = f1_ref[...] + f2t_ref[...]                                # (TM,1)+(1,N)
    e = jnp.where(e > 0, e, alpha * e)                            # LeakyReLU
    e = jnp.abs(w_ref[0:1, 0:1]) * e + jnp.abs(w_ref[1:2, 0:1]) * adj_ad_ref[...]
    e = jnp.where(adj_ref[...] > 0, e, jnp.float32(-9e15))
    e = e - jnp.max(e, axis=1, keepdims=True)
    p = jnp.exp(e)
    att = p / jnp.sum(p, axis=1, keepdims=True)
    hp = jnp.dot(att, h_ref[...], preferred_element_type=jnp.float32)  # (TM, F)
    hp = _elu(hp)                                     # outer F.elu on out_att
    y = jnp.dot(hp, lin_w_ref[...], preferred_element_type=jnp.float32)
    y = y + lin_b_ref[...]
    y = _elu(y)                                       # F.elu(linear_att(x))
    y = y - jnp.max(y, axis=1, keepdims=True)         # log_softmax(dim=1)
    out_ref[...] = y - jnp.log(jnp.sum(jnp.exp(y), axis=1, keepdims=True))


def out_att_and_classify(f1, f2t, h, adj, adj_ad, w_scal, lin_w, lin_b, *,
                         alpha, tm):
    n = adj.shape[0]
    f_dim = h.shape[1]
    nclass = lin_w.shape[1]
    grid = (pl.cdiv(n, tm),)
    cost = pl.CostEstimate(
        flops=int(2 * n * n * f_dim + 8 * n * n + 2 * n * f_dim * nclass),
        transcendentals=int(n * n + n * f_dim + 2 * n * nclass),
        bytes_accessed=int(4 * (2 * n * n + 2 * n * f_dim + f_dim * nclass
                                + n * nclass)))
    return pl.pallas_call(
        functools.partial(_out_head_kernel, alpha),
        out_shape=jax.ShapeDtypeStruct((n, nclass), jnp.float32),
        grid=grid,
        in_specs=[
            pl.BlockSpec((tm, 1), lambda i: (i, 0)),          # f1 row block
            pl.BlockSpec((1, n), lambda i: (0, 0)),           # f2^T, resident
            pl.BlockSpec((n, f_dim), lambda i: (0, 0)),       # h, resident
            pl.BlockSpec((tm, n), lambda i: (i, 0)),          # adj row slab
            pl.BlockSpec((tm, n), lambda i: (i, 0)),          # adj_ad row slab
            pl.BlockSpec((2, 1), lambda i: (0, 0)),           # W_ei / W_si
            pl.BlockSpec((f_dim, nclass), lambda i: (0, 0)),  # lin_W
            pl.BlockSpec((1, nclass), lambda i: (0, 0)),      # lin_b
        ],
        out_specs=pl.BlockSpec((tm, nclass), lambda i: (i, 0)),
        compiler_params=pltpu.CompilerParams(
            dimension_semantics=("parallel",),
            vmem_limit_bytes=_VMEM_LIMIT),
        cost_estimate=cost,
    )(f1, f2t, h, adj, adj_ad, w_scal, lin_w, lin_b)


# ----------------------------------------------------------------------------
# ADSF forward (glue in plain JAX)
# ----------------------------------------------------------------------------
def adsf_forward(params, x, adj, adj_ad, alpha):
    n = x.shape[0]
    tm = _row_tile(n)
    x = x.astype(jnp.float32)
    adj = adj.astype(jnp.float32)
    adj_ad = adj_ad.astype(jnp.float32)
    # F.dropout: identity (eval mode)

    heads = params["attentions"]
    nheads = len(heads)
    nhid = heads[0]["W"].shape[1]
    hdim = nheads * nhid

    # ---- layer 1: all heads fused into one projection + one attention call --
    w_all = jnp.concatenate([p["W"] for p in heads], axis=1)            # (F, H)
    a1_blk = jnp.zeros((hdim, nheads), jnp.float32)
    a2_blk = jnp.zeros((hdim, nheads), jnp.float32)
    for hd, p in enumerate(heads):
        a1_blk = a1_blk.at[hd * nhid:(hd + 1) * nhid, hd].set(p["a"][:nhid, 0])
        a2_blk = a2_blk.at[hd * nhid:(hd + 1) * nhid, hd].set(p["a"][nhid:, 0])
    w_scal1 = jnp.stack(
        [jnp.array([p["w_ei"] for p in heads], jnp.float32),
         jnp.array([p["w_si"] for p in heads], jnp.float32)], axis=0)   # (2, nh)

    h1, f1, f2 = project(x, w_all, a1_blk, a2_blk, tm=tm)
    xh = multi_head_attention(f1, f2.T, h1, adj, adj_ad, w_scal1,
                              nheads=nheads, nhid=nhid, alpha=alpha,
                              apply_elu=True, tm=tm)
    # F.dropout: identity (eval mode)

    # ---- layer 2 (out_att, concat=False) + classifier head, fused ----------
    po = params["out_att"]
    f_out = po["W"].shape[1]
    h2, g1, g2 = project(xh, po["W"], po["a"][:f_out, :], po["a"][f_out:, :],
                         tm=tm)
    w_scal2 = jnp.array([[po["w_ei"]], [po["w_si"]]], jnp.float32)      # (2, 1)
    # TODO(synk): the print_flag file-writing branch has no kernel equivalent.
    return out_att_and_classify(g1, g2.T, h2, adj, adj_ad, w_scal2,
                                params["lin_W"], params["lin_b"].reshape(1, -1),
                                alpha=alpha, tm=tm)


# ----------------------------------------------------------------------------
# Deterministic parameter init (xavier-uniform, gain 1.414 like the module)
# ----------------------------------------------------------------------------
def xavier_uniform(key, shape, gain=1.414):
    limit = gain * np.sqrt(6.0 / (shape[0] + shape[1]))
    return jax.random.uniform(key, shape, jnp.float32, -limit, limit)


def init_params(key, nfeat, nhid, nclass, nheads):
    keys = jax.random.split(key, 2 * nheads + 3)
    attentions = []
    for h_ in range(nheads):
        attentions.append({
            "W": xavier_uniform(keys[2 * h_], (nfeat, nhid)),
            "a": xavier_uniform(keys[2 * h_ + 1], (2 * nhid, 1)),
            "w_ei": 1.0,
            "w_si": 1.0,
        })
    out_att = {
        "W": xavier_uniform(keys[2 * nheads], (nhid * nheads, nfeat)),
        "a": xavier_uniform(keys[2 * nheads + 1], (2 * nfeat, 1)),
        "w_ei": 1.0,
        "w_si": 1.0,
    }
    lin_W = xavier_uniform(keys[2 * nheads + 2], (nfeat, nclass), gain=1.0)
    lin_b = jnp.zeros((nclass,), jnp.float32)
    return {"attentions": attentions, "out_att": out_att,
            "lin_W": lin_W, "lin_b": lin_b}


# ----------------------------------------------------------------------------
# Pure-JAX reference for correctness check
# ----------------------------------------------------------------------------
def _ref_sf_layer(x, W, a, adj, adj_ad, alpha, w_ei, w_si, apply_elu):
    h = x @ W
    fo = W.shape[1]
    f1 = h @ a[:fo]
    f2 = h @ a[fo:]
    e = jax.nn.leaky_relu(f1 + f2.T, negative_slope=alpha)
    e = jnp.abs(w_ei) * e + jnp.abs(w_si) * adj_ad
    e = jnp.where(adj > 0, e, -9e15)
    att = jax.nn.softmax(e, axis=1)
    hp = att @ h
    return jax.nn.elu(hp) if apply_elu else hp


def _ref_forward(params, x, adj, adj_ad, alpha):
    heads = [_ref_sf_layer(x, p["W"], p["a"], adj, adj_ad, alpha,
                           p["w_ei"], p["w_si"], True)
             for p in params["attentions"]]
    xh = jnp.concatenate(heads, axis=1)
    xo = jax.nn.elu(_ref_sf_layer(xh, params["out_att"]["W"], params["out_att"]["a"],
                                  adj, adj_ad, alpha, params["out_att"]["w_ei"],
                                  params["out_att"]["w_si"], False))
    y = jax.nn.elu(xo @ params["lin_W"] + params["lin_b"])
    return jax.nn.log_softmax(y, axis=1)


if __name__ == "__main__":
    N, nfeat, nhid, nclass, nheads = 8, 16, 8, 4, 2
    alpha = 0.2  # LeakyReLU negative slope; dropout=0.6 unused in eval mode

    key = jax.random.PRNGKey(0)
    kx, kadj, kad, kp = jax.random.split(key, 4)

    x = jax.random.normal(kx, (N, nfeat), jnp.float32)
    adj_rand = (jax.random.uniform(kadj, (N, N)) > 0.5).astype(jnp.float32)
    adj = jnp.clip(adj_rand + adj_rand.T + jnp.eye(N, dtype=jnp.float32), 0.0, 1.0)
    adj_ad = jax.random.uniform(kad, (N, N), dtype=jnp.float32) * adj

    params = init_params(kp, nfeat, nhid, nclass, nheads)

    out = adsf_forward(params, x, adj, adj_ad, alpha)
    out = jax.block_until_ready(out)

    ref = _ref_forward(params, x, adj, adj_ad, alpha)
    # tolerance accounts for MXU default-precision / accumulation-order
    # differences between the fused kernel matmuls and the XLA reference.
    np.testing.assert_allclose(np.asarray(out), np.asarray(ref),
                               rtol=1e-4, atol=1e-4)
    print("KERNEL_OK")
</pallas_src>

<mosaic_0001>
module attributes {stable_mosaic.version = 11 : i64} {
  func.func @_proj_kernel(%arg0: i32, %arg1: memref<8x16xf32, #tpu.memory_space<vmem>>, %arg2: memref<16x16xf32, #tpu.memory_space<vmem>>, %arg3: memref<16x2xf32, #tpu.memory_space<vmem>>, %arg4: memref<16x2xf32, #tpu.memory_space<vmem>>, %arg5: memref<8x16xf32, #tpu.memory_space<vmem>>, %arg6: memref<8x2xf32, #tpu.memory_space<vmem>>, %arg7: memref<8x2xf32, #tpu.memory_space<vmem>>) attributes {dimension_semantics = [#tpu.dimension_semantics<parallel>], iteration_bounds = array<i64: 1>, scalar_prefetch = 0 : i64, scratch_operands = 0 : i64, tpu.core_type = #tpu.core_type<tc>, window_params = [{transform_indices = @transform_0, window_bounds = array<i64: 8, 16>}, {pipeline_mode = #tpu.pipeline_mode<synchronous>, transform_indices = @transform_1, window_bounds = array<i64: 16, 16>}, {pipeline_mode = #tpu.pipeline_mode<synchronous>, transform_indices = @transform_2, window_bounds = array<i64: 16, 2>}, {pipeline_mode = #tpu.pipeline_mode<synchronous>, transform_indices = @transform_3, window_bounds = array<i64: 16, 2>}, {transform_indices = @transform_4, window_bounds = array<i64: 8, 16>}, {transform_indices = @transform_5, window_bounds = array<i64: 8, 2>}, {transform_indices = @transform_6, window_bounds = array<i64: 8, 2>}]} {
    %c0 = arith.constant 0 : index
    %c0_0 = arith.constant 0 : index
    %0 = vector.load %arg1[%c0, %c0_0] : memref<8x16xf32, #tpu.memory_space<vmem>>, vector<8x16xf32>
    %c0_1 = arith.constant 0 : index
    %c0_2 = arith.constant 0 : index
    %1 = vector.load %arg2[%c0_1, %c0_2] : memref<16x16xf32, #tpu.memory_space<vmem>>, vector<16x16xf32>
    %cst = arith.constant dense<0.000000e+00> : vector<8x16xf32>
    %2 = tpu.matmul %0, %1, %cst {dimension_numbers = #tpu.dot_dimension_numbers<[1], [0], [0], [1], [0, 0, 1, 1], [], []>} : vector<8x16xf32>, vector<16x16xf32>, vector<8x16xf32> -> vector<8x16xf32>
    %c0_3 = arith.constant 0 : index
    %c0_4 = arith.constant 0 : index
    %3 = vector.load %arg5[%c0_3, %c0_4] : memref<8x16xf32, #tpu.memory_space<vmem>>, vector<8x16xf32>
    tpu.vector_store %arg5[%c0_3, %c0_4], %2 {strides = array<i32>} : memref<8x16xf32, #tpu.memory_space<vmem>>, vector<8x16xf32>,
    %c0_5 = arith.constant 0 : index
    %c0_6 = arith.constant 0 : index
    %4 = vector.load %arg3[%c0_5, %c0_6] : memref<16x2xf32, #tpu.memory_space<vmem>>, vector<16x2xf32>
    %cst_7 = arith.constant dense<0.000000e+00> : vector<8x2xf32>
    %5 = tpu.matmul %2, %4, %cst_7 {dimension_numbers = #tpu.dot_dimension_numbers<[1], [0], [0], [1], [0, 0, 1, 1], [], []>} : vector<8x16xf32>, vector<16x2xf32>, vector<8x2xf32> -> vector<8x2xf32>
    %c0_8 = arith.constant 0 : index
    %c0_9 = arith.constant 0 : index
    %6 = vector.load %arg6[%c0_8, %c0_9] : memref<8x2xf32, #tpu.memory_space<vmem>>, vector<8x2xf32>
    tpu.vector_store %arg6[%c0_8, %c0_9], %5 {strides = array<i32>} : memref<8x2xf32, #tpu.memory_space<vmem>>, vector<8x2xf32>,
    %c0_10 = arith.constant 0 : index
    %c0_11 = arith.constant 0 : index
    %7 = vector.load %arg4[%c0_10, %c0_11] : memref<16x2xf32, #tpu.memory_space<vmem>>, vector<16x2xf32>
    %cst_12 = arith.constant dense<0.000000e+00> : vector<8x2xf32>
    %8 = tpu.matmul %2, %7, %cst_12 {dimension_numbers = #tpu.dot_dimension_numbers<[1], [0], [0], [1], [0, 0, 1, 1], [], []>} : vector<8x16xf32>, vector<16x2xf32>, vector<8x2xf32> -> vector<8x2xf32>
    %c0_13 = arith.constant 0 : index
    %c0_14 = arith.constant 0 : index
    %9 = vector.load %arg7[%c0_13, %c0_14] : memref<8x2xf32, #tpu.memory_space<vmem>>, vector<8x2xf32>
    tpu.vector_store %arg7[%c0_13, %c0_14], %8 {strides = array<i32>} : memref<8x2xf32, #tpu.memory_space<vmem>>, vector<8x2xf32>,
    return
  }
  func.func @transform_0(%arg0: i32) -> (i32, i32) {
    %c0_i32 = arith.constant 0 : i32
    %c0_i32_0 = arith.constant 0 : i32
    return %arg0, %c0_i32 : i32, i32
  }
  func.func @transform_1(%arg0: i32) -> (i32, i32) {
    %c0_i32 = arith.constant 0 : i32
    %c0_i32_0 = arith.constant 0 : i32
    %c0_i32_1 = arith.constant 0 : i32
    return %c0_i32, %c0_i32_0 : i32, i32
  }
  func.func @transform_2(%arg0: i32) -> (i32, i32) {
    %c0_i32 = arith.constant 0 : i32
    %c0_i32_0 = arith.constant 0 : i32
    %c0_i32_1 = arith.constant 0 : i32
    return %c0_i32, %c0_i32_0 : i32, i32
  }
  func.func @transform_3(%arg0: i32) -> (i32, i32) {
    %c0_i32 = arith.constant 0 : i32
    %c0_i32_0 = arith.constant 0 : i32
    %c0_i32_1 = arith.constant 0 : i32
    return %c0_i32, %c0_i32_0 : i32, i32
  }
  func.func @transform_4(%arg0: i32) -> (i32, i32) {
    %c0_i32 = arith.constant 0 : i32
    %c0_i32_0 = arith.constant 0 : i32
    return %arg0, %c0_i32 : i32, i32
  }
  func.func @transform_5(%arg0: i32) -> (i32, i32) {
    %c0_i32 = arith.constant 0 : i32
    %c0_i32_0 = arith.constant 0 : i32
    return %arg0, %c0_i32 : i32, i32
  }
  func.func @transform_6(%arg0: i32) -> (i32, i32) {
    %c0_i32 = arith.constant 0 : i32
    %c0_i32_0 = arith.constant 0 : i32
    return %arg0, %c0_i32 : i32, i32
  }
}

</mosaic_0001>

<llo_original>
// kernel: tpu_custom_call.1
$region0: #{tpu_custom_call.1}
  #allocation0 [shape = 'u32[]', space=smem, size = 0x4, offset = 0x4, fixed_abs, tag = 'smem constant byte address 0x4 - core index']
  #allocation1 [shape = 'u32[144,128]{1,0:T(1,128)}', space=vmem, size = 0x12000, scoped, tag = 'internal scratch']
  %s0 = inlined_call_operand.vmem [shape: f32[8,16], index: 0, kind: input, shape index: {}]
  %s1 = inlined_call_operand.vmem [shape: f32[16,16], index: 1, kind: input, shape index: {}]
  %s2 = inlined_call_operand.vmem [shape: f32[16,2], index: 2, kind: input, shape index: {}]
  %s3 = inlined_call_operand.vmem [shape: f32[16,2], index: 3, kind: input, shape index: {}]
  %s4 = inlined_call_operand.hbm [shape: f32[8,16], index: 4, kind: output, shape index: {0}]
  %s5 = inlined_call_operand.vmem [shape: f32[8,2], index: 5, kind: output, shape index: {1}]
  %s6 = inlined_call_operand.vmem [shape: f32[8,2], index: 6, kind: output, shape index: {2}]
  %7 = xla_tuple %s4, %s5, %s6
  %s8 = sld [smem:[#allocation0]]
  $region42: #{tpu_custom_call.1} parent=0
    _
  %s10 = ssub.s32 1, %s8
  %s11 = scalar_select 0, %s10, %s8
  $region1: #{tpu_custom_call.1} parent=0
    #allocation2 [shape = 'u8[4096]{0}', space=vmem, size = 0x1000, scoped, tag = 'output window, operand 0, single buffered']
    #allocation3 [shape = 's32[1]{0}', space=sflag, size = 0x4, scoped, tag = 'scoped memory for tpu_custom_call.1']
    %12 = vsyncpa [#allocation3], 0
    // Predicated region
    $region2: #{tpu_custom_call.1} parent=1 // pred_check
      _
    $region3: #{tpu_custom_call.1} parent=1 // pred_check_branch
      %14 = sbr.rel (0) target = $region5
    $region4: #{tpu_custom_call.1} parent=1 // pred_region
      _
    $region5: #{tpu_custom_call.1} parent=1 // pred_fallthru
      _
    // Predicated region
    $region6: #{tpu_custom_call.1} parent=1 // pred_check
      _
    $region7: #{tpu_custom_call.1} parent=1 // pred_check_branch
      %16 = sbr.rel (0) target = $region9
    $region8: #{tpu_custom_call.1} parent=1 // pred_region
      _
    $region9: #{tpu_custom_call.1} parent=1 // pred_fallthru
      _
    // Predicated region
    $region10: #{tpu_custom_call.1} parent=1 // pred_check
      _
    $region11: #{tpu_custom_call.1} parent=1 // pred_check_branch
      %18 = sbr.rel (0) target = $region13
    $region12: #{tpu_custom_call.1} parent=1 // pred_region
      _
    $region13: #{tpu_custom_call.1} parent=1 // pred_fallthru
      _
    // Predicated region
    $region14: #{tpu_custom_call.1} parent=1 // pred_check
      _
    $region15: #{tpu_custom_call.1} parent=1 // pred_check_branch
      %20 = sbr.rel (0) target = $region17
    $region16: #{tpu_custom_call.1} parent=1 // pred_region
      _
    $region17: #{tpu_custom_call.1} parent=1 // pred_fallthru
      _
    %v21 = vld [vmem:[%s0] sm:$0xff]
    %v22 = vld [vmem:[%s1] sm:$0xff]
    %v23 = vld [vmem:[%s1 + $0x8] sm:$0xff]
    %vm24 = vcmask 130048
    %v26 = vsel %vm24, %v21, 0
    %28 = vmatprep.subr.mxu0 0.0
    %29 = vmatpush1.msra.mxu0 0.0
    %30 = vmatprep.subr.mxu0 0.0
    %31 = vmatpush1.msra.mxu0 0.0
    %32 = vmatprep.subr.mxu0 0.0
    %33 = vmatpush1.msra.mxu0 0.0
    %34 = vmatprep.subr.mxu0 0.0
    %35 = vmatpush1.msra.mxu0 0.0
    %36 = vmatprep.subr.mxu0 0.0
    %37 = vmatpush1.msra.mxu0 0.0
    %38 = vmatprep.subr.mxu0 0.0
    %39 = vmatpush1.msra.mxu0 0.0
    %40 = vmatprep.subr.mxu0 0.0
    %41 = vmatpush1.msra.mxu0 0.0
    %42 = vmatprep.subr.mxu0 0.0
    %43 = vmatpush1.msra.mxu0 0.0
    %44 = vmatprep.subr.mxu0 0.0
    %45 = vmatpush1.msra.mxu0 0.0
    %46 = vmatprep.subr.mxu0 0.0
    %47 = vmatpush1.msra.mxu0 0.0
    %48 = vmatprep.subr.mxu0 0.0
    %49 = vmatpush1.msra.mxu0 0.0
    %50 = vmatprep.subr.mxu0 0.0
    %51 = vmatpush1.msra.mxu0 0.0
    %52 = vmatprep.subr.mxu0 0.0
    %53 = vmatpush1.msra.mxu0 0.0
    %54 = vmatprep.subr.mxu0 0.0
    %55 = vmatpush1.msra.mxu0 0.0
    %56 = vmatprep.subr.mxu0 0.0
    %57 = vmatpush1.msra.mxu0 %v23
    %58 = vmatprep.subr.mxu0 0.0
    %59 = vmatpush1.msra.mxu0 %v22
    %60 = vmatprep.subr.mxu0 0.0
    %61 = vmatpush2.msra.mxu0 0.0
    %62 = vmatprep.subr.mxu0 0.0
    %63 = vmatpush2.msra.mxu0 0.0
    %64 = vmatprep.subr.mxu0 0.0
    %65 = vmatpush2.msra.mxu0 0.0
    %66 = vmatprep.subr.mxu0 0.0
    %67 = vmatpush2.msra.mxu0 0.0
    %68 = vmatprep.subr.mxu0 0.0
    %69 = vmatpush2.msra.mxu0 0.0
    %70 = vmatprep.subr.mxu0 0.0
    %71 = vmatpush2.msra.mxu0 0.0
    %72 = vmatprep.subr.mxu0 0.0
    %73 = vmatpush2.msra.mxu0 0.0
    %74 = vmatprep.subr.mxu0 0.0
    %75 = vmatpush2.msra.mxu0 0.0
    %76 = vmatprep.subr.mxu0 0.0
    %77 = vmatpush2.msra.mxu0 0.0
    %78 = vmatprep.subr.mxu0 0.0
    %79 = vmatpush2.msra.mxu0 0.0
    %80 = vmatprep.subr.mxu0 0.0
    %81 = vmatpush2.msra.mxu0 0.0
    %82 = vmatprep.subr.mxu0 0.0
    %83 = vmatpush2.msra.mxu0 0.0
    %84 = vmatprep.subr.mxu0 0.0
    %85 = vmatpush2.msra.mxu0 0.0
    %86 = vmatprep.subr.mxu0 0.0
    %87 = vmatpush2.msra.mxu0 0.0
    %88 = vmatprep.subr.mxu0 0.0
    %89 = vmatpush2.msra.mxu0 0.0
    %90 = vmatprep.subr.mxu0 0.0
    %91 = vmatpush2.msra.mxu0 0.0
    %92 = vmatprep.mubr.f32.mxu0 0.0
    %93 = vmatmul.mubr.f32.gmra.mxu0 %v26
    %v94 = vpop.f32.mrf.mxu0
    %v95 = vadd.f32 0.0, %v94
    %v96 = vpop.f32.mrf.mxu0
    %97 = vdwg.mxu0
    %98 = vst.msk [vmem:[#allocation2] sm:$0xff] %vm24, %v95
    %v99 = vld [vmem:[%s2] sm:$0xff]
    %v100 = vld [vmem:[%s2 + $0x8] sm:$0xff]
    %v102 = vsel %vm24, %v95, 0
    %104 = vmatprep.subr.mxu0 0.0
    %105 = vmatpush1.msra.mxu0 0.0
    %106 = vmatprep.subr.mxu0 0.0
    %107 = vmatpush1.msra.mxu0 0.0
    %108 = vmatprep.subr.mxu0 0.0
    %109 = vmatpush1.msra.mxu0 0.0
    %110 = vmatprep.subr.mxu0 0.0
    %111 = vmatpush1.msra.mxu0 0.0
    %112 = vmatprep.subr.mxu0 0.0
    %113 = vmatpush1.msra.mxu0 0.0
    %114 = vmatprep.subr.mxu0 0.0
    %115 = vmatpush1.msra.mxu0 0.0
    %116 = vmatprep.subr.mxu0 0.0
    %117 = vmatpush1.msra.mxu0 0.0
    %118 = vmatprep.subr.mxu0 0.0
    %119 = vmatpush1.msra.mxu0 0.0
    %120 = vmatprep.subr.mxu0 0.0
    %121 = vmatpush1.msra.mxu0 0.0
    %122 = vmatprep.subr.mxu0 0.0
    %123 = vmatpush1.msra.mxu0 0.0
    %124 = vmatprep.subr.mxu0 0.0
    %125 = vmatpush1.msra.mxu0 0.0
    %126 = vmatprep.subr.mxu0 0.0
    %127 = vmatpush1.msra.mxu0 0.0
    %128 = vmatprep.subr.mxu0 0.0
    %129 = vmatpush1.msra.mxu0 0.0
    %130 = vmatprep.subr.mxu0 0.0
    %131 = vmatpush1.msra.mxu0 0.0
    %132 = vmatprep.subr.mxu0 0.0
    %133 = vmatpush1.msra.mxu0 %v100
    %134 = vmatprep.subr.mxu0 0.0
    %135 = vmatpush1.msra.mxu0 %v99
    %136 = vmatprep.subr.mxu0 0.0
    %137 = vmatpush2.msra.mxu0 0.0
    %138 = vmatprep.subr.mxu0 0.0
    %139 = vmatpush2.msra.mxu0 0.0
    %140 = vmatprep.subr.mxu0 0.0
    %141 = vmatpush2.msra.mxu0 0.0
    %142 = vmatprep.subr.mxu0 0.0
    %143 = vmatpush2.msra.mxu0 0.0
    %144 = vmatprep.subr.mxu0 0.0
    %145 = vmatpush2.msra.mxu0 0.0
    %146 = vmatprep.subr.mxu0 0.0
    %147 = vmatpush2.msra.mxu0 0.0
    %148 = vmatprep.subr.mxu0 0.0
    %149 = vmatpush2.msra.mxu0 0.0
    %150 = vmatprep.subr.mxu0 0.0
    %151 = vmatpush2.msra.mxu0 0.0
    %152 = vmatprep.subr.mxu0 0.0
    %153 = vmatpush2.msra.mxu0 0.0
    %154 = vmatprep.subr.mxu0 0.0
    %155 = vmatpush2.msra.mxu0 0.0
    %156 = vmatprep.subr.mxu0 0.0
    %157 = vmatpush2.msra.mxu0 0.0
    %158 = vmatprep.subr.mxu0 0.0
    %159 = vmatpush2.msra.mxu0 0.0
    %160 = vmatprep.subr.mxu0 0.0
    %161 = vmatpush2.msra.mxu0 0.0
    %162 = vmatprep.subr.mxu0 0.0
    %163 = vmatpush2.msra.mxu0 0.0
    %164 = vmatprep.subr.mxu0 0.0
    %165 = vmatpush2.msra.mxu0 0.0
    %166 = vmatprep.subr.mxu0 0.0
    %167 = vmatpush2.msra.mxu0 0.0
    %168 = vmatprep.mubr.f32.mxu0 0.0
    %169 = vmatmul.mubr.f32.gmra.mxu0 %v102
    %v170 = vpop.f32.mrf.mxu0
    %v171 = vadd.f32 0.0, %v170
    %v172 = vpop.f32.mrf.mxu0
    %173 = vdwg.mxu0
    %vm174 = vcmask 15360
    %175 = vst.msk [vmem:[%s5] sm:$0xff] %vm174, %v171
    %v176 = vld [vmem:[%s3] sm:$0xff]
    %v177 = vld [vmem:[%s3 + $0x8] sm:$0xff]
    %178 = vmatprep.subr.mxu0 0.0
    %179 = vmatpush1.msra.mxu0 0.0
    %180 = vmatprep.subr.mxu0 0.0
    %181 = vmatpush1.msra.mxu0 0.0
    %182 = vmatprep.subr.mxu0 0.0
    %183 = vmatpush1.msra.mxu0 0.0
    %184 = vmatprep.subr.mxu0 0.0
    %185 = vmatpush1.msra.mxu0 0.0
    %186 = vmatprep.subr.mxu0 0.0
    %187 = vmatpush1.msra.mxu0 0.0
    %188 = vmatprep.subr.mxu0 0.0
    %189 = vmatpush1.msra.mxu0 0.0
    %190 = vmatprep.subr.mxu0 0.0
    %191 = vmatpush1.msra.mxu0 0.0
    %192 = vmatprep.subr.mxu0 0.0
    %193 = vmatpush1.msra.mxu0 0.0
    %194 = vmatprep.subr.mxu0 0.0
    %195 = vmatpush1.msra.mxu0 0.0
    %196 = vmatprep.subr.mxu0 0.0
    %197 = vmatpush1.msra.mxu0 0.0
    %198 = vmatprep.subr.mxu0 0.0
    %199 = vmatpush1.msra.mxu0 0.0
    %200 = vmatprep.subr.mxu0 0.0
    %201 = vmatpush1.msra.mxu0 0.0
    %202 = vmatprep.subr.mxu0 0.0
    %203 = vmatpush1.msra.mxu0 0.0
    %204 = vmatprep.subr.mxu0 0.0
    %205 = vmatpush1.msra.mxu0 0.0
    %206 = vmatprep.subr.mxu0 0.0
    %207 = vmatpush1.msra.mxu0 %v177
    %208 = vmatprep.subr.mxu0 0.0
    %209 = vmatpush1.msra.mxu0 %v176
    %210 = vmatprep.subr.mxu0 0.0
    %211 = vmatpush2.msra.mxu0 0.0
    %212 = vmatprep.subr.mxu0 0.0
    %213 = vmatpush2.msra.mxu0 0.0
    %214 = vmatprep.subr.mxu0 0.0
    %215 = vmatpush2.msra.mxu0 0.0
    %216 = vmatprep.subr.mxu0 0.0
    %217 = vmatpush2.msra.mxu0 0.0
    %218 = vmatprep.subr.mxu0 0.0
    %219 = vmatpush2.msra.mxu0 0.0
    %220 = vmatprep.subr.mxu0 0.0
    %221 = vmatpush2.msra.mxu0 0.0
    %222 = vmatprep.subr.mxu0 0.0
    %223 = vmatpush2.msra.mxu0 0.0
    %224 = vmatprep.subr.mxu0 0.0
    %225 = vmatpush2.msra.mxu0 0.0
    %226 = vmatprep.subr.mxu0 0.0
    %227 = vmatpush2.msra.mxu0 0.0
    %228 = vmatprep.subr.mxu0 0.0
    %229 = vmatpush2.msra.mxu0 0.0
    %230 = vmatprep.subr.mxu0 0.0
    %231 = vmatpush2.msra.mxu0 0.0
    %232 = vmatprep.subr.mxu0 0.0
    %233 = vmatpush2.msra.mxu0 0.0
    %234 = vmatprep.subr.mxu0 0.0
    %235 = vmatpush2.msra.mxu0 0.0
    %236 = vmatprep.subr.mxu0 0.0
    %237 = vmatpush2.msra.mxu0 0.0
    %238 = vmatprep.subr.mxu0 0.0
    %239 = vmatpush2.msra.mxu0 0.0
    %240 = vmatprep.subr.mxu0 0.0
    %241 = vmatpush2.msra.mxu0 0.0
    %242 = vmatprep.mubr.f32.mxu0 0.0
    %243 = vmatmul.mubr.f32.gmra.mxu0 %v102
    %v244 = vpop.f32.mrf.mxu0
    %v245 = vadd.f32 0.0, %v244
    %v246 = vpop.f32.mrf.mxu0
    %247 = vdwg.mxu0
    %248 = vst.msk [vmem:[%s6] sm:$0xff] %vm174, %v245
    // Predicated region
    $region18: #{tpu_custom_call.1} parent=1 // pred_check
      _
    $region19: #{tpu_custom_call.1} parent=1 // pred_check_branch
      %250 = sbr.rel (0) target = $region21
    $region20: #{tpu_custom_call.1} parent=1 // pred_region
      %s252 = ssub.s32 128, 128
      %253 = vsyncadd [#allocation3], %s252
      %s255 = sshll.u32 [#allocation2], 4
      %s256 = int_to_ptr.vmem [resolvable:$true] %s255
      %258 = dma.vmem_to_hbm [thread:$0]  %s256, 128, %s4, [#allocation3]
    $region21: #{tpu_custom_call.1} parent=1 // pred_fallthru
      _
    // Predicated region
    $region22: #{tpu_custom_call.1} parent=1 // pred_check
      _
    $region23: #{tpu_custom_call.1} parent=1 // pred_check_branch
      %260 = sbr.rel (0) target = $region25
    $region24: #{tpu_custom_call.1} parent=1 // pred_region
      _
    $region25: #{tpu_custom_call.1} parent=1 // pred_fallthru
      _
    // Predicated region
    $region26: #{tpu_custom_call.1} parent=1 // pred_check
      _
    $region27: #{tpu_custom_call.1} parent=1 // pred_check_branch
      %262 = sbr.rel (0) target = $region29
    $region28: #{tpu_custom_call.1} parent=1 // pred_region
      _
    $region29: #{tpu_custom_call.1} parent=1 // pred_fallthru
      _
    // Predicated region
    $region30: #{tpu_custom_call.1} parent=1 // pred_check
      _
    $region31: #{tpu_custom_call.1} parent=1 // pred_check_branch
      %264 = sbr.rel (0) target = $region33
    $region32: #{tpu_custom_call.1} parent=1 // pred_region
      %265 = dma.done [#allocation3], 128
    $region33: #{tpu_custom_call.1} parent=1 // pred_fallthru
      _
    // Predicated region
    $region34: #{tpu_custom_call.1} parent=1 // pred_check
      _
    $region35: #{tpu_custom_call.1} parent=1 // pred_check_branch
      %267 = sbr.rel (0) target = $region37
    $region36: #{tpu_custom_call.1} parent=1 // pred_region
      _
    $region37: #{tpu_custom_call.1} parent=1 // pred_fallthru
      _
    // Predicated region
    $region38: #{tpu_custom_call.1} parent=1 // pred_check
      _
    $region39: #{tpu_custom_call.1} parent=1 // pred_check_branch
      %269 = sbr.rel (0) target = $region41
    $region40: #{tpu_custom_call.1} parent=1 // pred_region
      _
    $region41: #{tpu_custom_call.1} parent=1 // pred_fallthru
      _
    %270 = vsyncpa [#allocation3], 1

</llo_original>
